<compile_context>
chip_gen: v6e
topology: v6e:2x2x1
jax: 0.10.0
libtpu: 0.0.40
codegen_flags: <defaults>
</compile_context>

<pallas_src>
from typing import NamedTuple
import numpy as np
import jax
import jax.numpy as jnp
from jax.experimental import pallas as pl
from jax.experimental.pallas import tpu as pltpu


def _round_up(v, m):
    return ((v + m - 1) // m) * m


def _vmem_limit_bytes():
    # ~3/4 of physical VMEM: ~96 MiB on 128-MiB parts (v5e/v6e), ~48 MiB on v7x (64 MiB).
    try:
        cap = int(pltpu.get_tpu_info().vmem_capacity_bytes)
    except Exception:
        cap = 64 << 20
    return int(max(32 << 20, min(cap * 3 // 4, 96 << 20)))


class UnpoolInfo(NamedTuple):
    edge_index: jnp.ndarray
    cluster: jnp.ndarray
    batch: jnp.ndarray
    new_edge_score: jnp.ndarray


# ----------------------------------------------------------------------------
# Pallas kernel 1: fused gather + edge-score MLP (lin2 -> leaky_relu -> lin -> sigmoid)
#   Pa/Pb = lin2-weights @ x^T are precomputed (bf16); kernel does the gather as a bf16
#   one-hot MXU matmul, chunked over nodes, then bias + leaky_relu + width-1 projection
#   + stable sigmoid.  Output is the lane-dense row (1, E_pad).
# ----------------------------------------------------------------------------
def _edge_score_kernel(pa_ref, pb_ref, ei_ref, b2_ref, w1_ref, b1_ref, out_ref):
    n_chunks, c2, chunk_n = pa_ref.shape
    te = ei_ref.shape[1]

    ei = ei_ref[...]                                      # (2, TE) int32 (edges on lanes)
    src = ei[0:1, :]                                      # (1, TE)
    dst = ei[1:2, :]
    # One iota, reused for both compares and all chunks (shift src/dst instead).
    ids = jax.lax.broadcasted_iota(jnp.int32, (chunk_n, te), 0)

    def contract(pa_c, pb_c, src_c, dst_c):
        oh_s = (ids == src_c).astype(jnp.bfloat16)        # (chunk, TE) bf16 one-hot
        oh_d = (ids == dst_c).astype(jnp.bfloat16)
        return (jnp.dot(pa_c, oh_s, preferred_element_type=jnp.float32)
                + jnp.dot(pb_c, oh_d, preferred_element_type=jnp.float32))

    if n_chunks == 1:
        h = contract(pa_ref[0], pb_ref[0], src, dst)
    else:
        def body(c, acc):
            base = c * chunk_n
            return acc + contract(pa_ref[c], pb_ref[c], src - base, dst - base)
        h = jax.lax.fori_loop(0, n_chunks, body, jnp.zeros((c2, te), jnp.float32))

    h = h + b2_ref[...]                                   # (2C, TE) f32
    h = jnp.where(h > 0, h, 0.01 * h)                     # leaky_relu (slope 0.01), VPU

    # lin (width-1 projection): VPU multiply + sublane reduce (keeps the MXU free).
    s = jnp.sum(h * w1_ref[...], axis=0, keepdims=True) + b1_ref[...]   # (1, TE)

    # numerically stable sigmoid:  t = exp(-|s|) in (0, 1]  (no overflow)
    t = jnp.exp(-jnp.abs(s))
    r = pl.reciprocal(1.0 + t, approx=True)               # EUP slot
    out_ref[...] = jnp.where(s >= 0, r, t * r)


def edge_score_pallas(pa, pb, ei_pad, b2c, w1c, b1, *, block_e):
    n_chunks, C2, chunk_n = pa.shape
    n_pad = n_chunks * chunk_n
    E_pad = ei_pad.shape[1]
    grid = (E_pad // block_e,)
    return pl.pallas_call(
        _edge_score_kernel,
        out_shape=jax.ShapeDtypeStruct((1, E_pad), jnp.float32),
        grid=grid,
        in_specs=[
            pl.BlockSpec((n_chunks, C2, chunk_n), lambda i: (0, 0, 0)),  # Pa resident bf16
            pl.BlockSpec((n_chunks, C2, chunk_n), lambda i: (0, 0, 0)),  # Pb resident bf16
            pl.BlockSpec((2, block_e), lambda i: (0, i)),                # edge tile (pipelined)
            pl.BlockSpec((C2, 1), lambda i: (0, 0)),                     # b2 column
            pl.BlockSpec((C2, 1), lambda i: (0, 0)),                     # lin weight column
            pl.BlockSpec((1, 1), lambda i: (0, 0)),                      # lin bias
        ],
        out_specs=pl.BlockSpec((1, block_e), lambda i: (0, i)),          # lane-dense output
        compiler_params=pltpu.CompilerParams(
            dimension_semantics=("parallel",),
            vmem_limit_bytes=_vmem_limit_bytes()),
        cost_estimate=pl.CostEstimate(
            flops=4 * C2 * n_pad * E_pad,
            transcendentals=2 * E_pad,
            bytes_accessed=2 * (2 * C2 * n_pad) + 4 * 2 * E_pad + 4 * E_pad),
    )(pa, pb, ei_pad, b2c, w1c, b1)
    # TODO(synk): for graphs where Pa/Pb (2 * 2C * N_pad bf16) exceed VMEM, add a node
    # grid axis so Pa/Pb chunks are streamed instead of held resident.


def _edge_tiles(E):
    if E <= 128:
        te = _round_up(max(E, 1), 128)
    else:
        # >= 2 grid steps so the "parallel" edge axis shards across v7x's 2 TensorCores;
        # tiles up to 512 lanes wide to amortize per-step overhead.
        te = max(128, min(512, _round_up(E, 256) // 2))
    return te, _round_up(E, te)


# ----------------------------------------------------------------------------
# Pallas kernel 2: pruned scatter-mean over clusters + per-cluster score scaling.
#   Nodes are pre-sorted by cluster id; scalar-prefetched per-cluster-tile node-block
#   offsets make each cluster tile visit only the <= 3 node tiles that can contain its
#   clusters.  Accumulation goes straight into out_ref (resident across the ni axis).
# ----------------------------------------------------------------------------
def _scatter_mean_scale_kernel(off_ref, x_ref, cl_ref, score_ref, out_ref):
    ci = pl.program_id(0)          # cluster-row tile ("parallel")
    ni = pl.program_id(1)          # node-tile step    ("arbitrary", reduction)

    @pl.when(ni == 0)
    def _():
        out_ref[...] = jnp.zeros_like(out_ref)

    tnc = out_ref.shape[0]
    tn = x_ref.shape[0]
    cl = cl_ref[...]                                              # (1, TN) sorted cluster ids (-1 pad)
    rows = jax.lax.broadcasted_iota(jnp.int32, (tnc, tn), 0)
    onehot = (rows == (cl - ci * tnc)).astype(jnp.bfloat16)       # (TNC, TN) bf16 (exact 0/1)
    # x_ref columns: [ones | C channels | zero pad] -> counts come out of the same matmul.
    out_ref[...] += jnp.dot(onehot, x_ref[...], preferred_element_type=jnp.float32)

    @pl.when(ni == pl.num_programs(1) - 1)
    def _():
        acc = out_ref[...]
        counts = acc[:, 0:1]                                      # (TNC, 1) exact counts
        inv = 1.0 / jnp.maximum(counts, 1.0)                      # exact divide for the mean
        out_ref[...] = acc * (inv * score_ref[...])               # fused mean + score scaling


def scatter_mean_scale_pallas(node_block_off, x_aug, cluster_row, score_col, *,
                              block_nc, block_n, n_node_steps):
    N_pad, Cp = x_aug.shape
    n_ctiles = N_pad // block_nc
    grid = (n_ctiles, n_node_steps)
    return pl.pallas_call(
        _scatter_mean_scale_kernel,
        out_shape=jax.ShapeDtypeStruct((N_pad, Cp), jnp.float32),
        grid_spec=pltpu.PrefetchScalarGridSpec(
            num_scalar_prefetch=1,
            grid=grid,
            in_specs=[
                pl.BlockSpec((block_n, Cp), lambda ci, ni, off: (off[ci] + ni, 0)),   # sorted x tile
                pl.BlockSpec((1, block_n), lambda ci, ni, off: (0, off[ci] + ni)),    # sorted cluster ids
                pl.BlockSpec((block_nc, 1), lambda ci, ni, off: (ci, 0)),             # per-cluster score
            ],
            out_specs=pl.BlockSpec((block_nc, Cp), lambda ci, ni, off: (ci, 0)),
        ),
        compiler_params=pltpu.CompilerParams(
            dimension_semantics=("parallel", "arbitrary"),
            vmem_limit_bytes=_vmem_limit_bytes()),
        cost_estimate=pl.CostEstimate(
            flops=2 * n_ctiles * n_node_steps * block_nc * block_n * Cp,
            transcendentals=0,
            bytes_accessed=2 * N_pad * Cp + 4 * N_pad * Cp + 8 * N_pad),
    )(node_block_off, x_aug, cluster_row, score_col)


def _pool_tiles(N, C):
    t = min(_round_up(max(N, 1), 128), 512)     # cluster-row tile == sorted-node tile
    n_pad = _round_up(max(N, 1), t)
    cp = _round_up(C + 1, 128)                  # ones column + C channels, 128-lane padded
    n_blocks = n_pad // t
    # Clusters have <= 2 member nodes, so a tile of t clusters spans <= 2*t consecutive
    # sorted nodes -> at most 3 node tiles of size t, independent of N.
    n_steps = min(3, n_blocks)
    return t, n_pad, cp, n_steps


# ----------------------------------------------------------------------------
# EdgePoolingRGCN (forward only)
# ----------------------------------------------------------------------------
class EdgePoolingRGCNPallas:
    def __init__(self, in_channels, min_edge_score, min_edge_percentile, params,
                 num_attr=20):
        self.in_channels = int(in_channels)
        self.min_edge_score = float(min_edge_score)
        self.min_edge_percentile = float(min_edge_percentile)
        self.num_attr = num_attr

        # params are in torch layout: lin2.weight [2C,2C], lin2.bias [2C],
        #                             lin.weight  [1,2C],  lin.bias  [1]
        w2, b2, w1, b1 = params
        C = self.in_channels
        self.wa = jnp.asarray(w2[:, :C]).astype(jnp.bfloat16)          # (2C, C)
        self.wb = jnp.asarray(w2[:, C:]).astype(jnp.bfloat16)          # (2C, C)
        self.b2c = jnp.asarray(b2, jnp.float32).reshape(2 * C, 1)      # (2C, 1)
        self.w1c = jnp.asarray(w1, jnp.float32).reshape(2 * C, 1)      # (2C, 1)
        self.b1 = jnp.asarray(b1, jnp.float32).reshape(1, 1)           # (1, 1)

        # single jitted graph per stage -> one device round-trip between them
        self._edge_scores = jax.jit(self._edge_scores_impl)
        self._pool_features = jax.jit(self._pool_features_impl)

    # ---- jitted stage 1: edge-score MLP with fused gather --------------------
    def _edge_scores_impl(self, x, edge_index):
        N, C = x.shape
        C2 = 2 * C
        E = edge_index.shape[1]

        chunk_n = 512 if N > 512 else _round_up(max(N, 1), 128)
        n_pad = _round_up(N, chunk_n)
        n_chunks = n_pad // chunk_n
        te, e_pad = _edge_tiles(E)

        ei = jnp.pad(edge_index.astype(jnp.int32), ((0, 0), (0, e_pad - E)))
        xt = jnp.pad(x.astype(jnp.float32),
                     ((0, n_pad - N), (0, 0))).T.astype(jnp.bfloat16)   # (C, N_pad) bf16

        # Fold lin2 into the gather: Pa = Wa @ x^T, Pb = Wb @ x^T (computed once, bf16),
        # reshaped to (n_chunks, 2C, chunk_n) so the kernel indexes chunks on axis 0.
        pa = jnp.dot(self.wa, xt, preferred_element_type=jnp.float32)
        pb = jnp.dot(self.wb, xt, preferred_element_type=jnp.float32)
        pa = pa.reshape(C2, n_chunks, chunk_n).transpose(1, 0, 2).astype(jnp.bfloat16)
        pb = pb.reshape(C2, n_chunks, chunk_n).transpose(1, 0, 2).astype(jnp.bfloat16)

        scores = edge_score_pallas(pa, pb, ei, self.b2c, self.w1c, self.b1,
                                   block_e=te)                         # (1, E_pad)
        # NOTE: padded edge columns gather node 0; their scores are discarded here.
        return scores[0, :E]

    # ---- jitted stage 2: pruned scatter-mean + score scaling -----------------
    def _pool_features_impl(self, x, order, cluster_row, score_col, node_block_off):
        N, C = x.shape
        t, n_pad, cp, n_steps = _pool_tiles(N, C)
        # Gather nodes into cluster-sorted order (plain XLA gather, outside the kernel).
        xs = jnp.take(x, order, axis=0).astype(jnp.bfloat16)
        x_aug = jnp.zeros((n_pad, cp), jnp.bfloat16)
        x_aug = x_aug.at[:N, 0].set(1.0)                               # count column (exact in bf16)
        x_aug = x_aug.at[:N, 1:C + 1].set(xs)
        out = scatter_mean_scale_pallas(node_block_off, x_aug, cluster_row, score_col,
                                        block_nc=t, block_n=t, n_node_steps=n_steps)
        return out[:, 1:C + 1]                                         # (N_pad, C)

    def forward(self, x, edge_index, edge_attr, batch):
        N, C = x.shape

        # --- Pallas kernel 1: per-edge score MLP (gather fused in-kernel) ---
        edge_score = self._edge_scores(x, edge_index)                  # [E] on device

        # --- single host sync for everything the greedy loop needs ---
        es, ei, bt, ea = jax.device_get((edge_score, edge_index, batch, edge_attr))
        es = np.asarray(es); ei = np.asarray(ei)
        bt = np.asarray(bt); ea = np.asarray(ea)

        # --- host-side greedy merge (sequential, data-dependent) ---
        # TODO(synk): greedy edge contraction is inherently sequential; stays on host.
        perm = np.argsort(-es, kind="stable")          # descending, stable
        mask = np.ones(N, dtype=bool)
        cluster = np.zeros(N, dtype=np.int32)
        new_edge_indices = []
        i = 0
        counter = 0
        for edge_idx in perm:
            counter += 1
            if counter >= len(perm) * (1 - self.min_edge_percentile):
                break
            if es[edge_idx] < self.min_edge_score:
                break
            source = int(ei[0, edge_idx])
            if not mask[source]:
                continue
            target = int(ei[1, edge_idx])
            if not mask[target]:
                continue
            new_edge_indices.append(int(edge_idx))
            cluster[source] = i
            mask[source] = False
            if source != target:
                cluster[target] = i
                mask[target] = False
            i += 1
        j = int(mask.sum())
        cluster[mask] = np.arange(i, i + j, dtype=np.int32)
        num_clusters = i + j

        new_edge_score = (es[np.asarray(new_edge_indices, dtype=np.int64)]
                          if new_edge_indices else np.zeros((0,), np.float32))
        if j > 0:
            # NOTE: matches the spec (remaining_score = ones * 0 -> zeros).
            remaining = np.zeros(num_clusters - len(new_edge_indices), np.float32)
            new_edge_score = np.concatenate([new_edge_score.astype(np.float32), remaining])

        # --- host prep for the pruned scatter sweep: sort nodes by cluster id so each
        #     tile of `t` clusters touches <= 2*t consecutive sorted nodes. ---
        t, n_pad, cp, n_steps = _pool_tiles(N, C)
        n_blocks = n_pad // t
        n_ctiles = n_pad // t
        order = np.argsort(cluster, kind="stable").astype(np.int32)
        cl_sorted = cluster[order]
        starts = np.searchsorted(cl_sorted, np.arange(n_ctiles, dtype=np.int64) * t)
        node_block_off = np.minimum(starts // t,
                                    max(n_blocks - n_steps, 0)).astype(np.int32)
        cluster_row = np.full((1, n_pad), -1, np.int32)
        cluster_row[0, :N] = cl_sorted
        score_col = np.zeros((n_pad, 1), np.float32)
        score_col[:num_clusters, 0] = new_edge_score

        # --- Pallas kernel 2: pruned scatter-mean + score scaling ---
        new_x_full = self._pool_features(x, jnp.asarray(order), jnp.asarray(cluster_row),
                                         jnp.asarray(score_col),
                                         jnp.asarray(node_block_off))
        new_x = new_x_full[:num_clusters]

        # --- coalesce pooled edges + fix_pooled_edge_attrs (host glue) ---
        # TODO(synk): coalesce / fix_pooled_edge_attrs are list-style glue; stays on host.
        pooled_ei = cluster[ei]                                        # (2, E)
        keys = pooled_ei[0].astype(np.int64) * num_clusters + pooled_ei[1].astype(np.int64)
        uniq = np.unique(keys)
        new_edge_index = np.stack([uniq // num_clusters, uniq % num_clusters]).astype(np.int32)
        new_edge_attr = np.zeros((len(uniq), ea.shape[1]), np.float32)
        inv = np.searchsorted(uniq, keys)
        np.add.at(new_edge_attr, inv, ea)                              # duplicates reduce by sum
        for r in range(new_edge_attr.shape[0]):                        # fix_pooled_edge_attrs
            e = new_edge_attr[r]
            if e.sum() > 1:
                ind = int(np.argmax(e >= 1))
                fixed = np.zeros(ea.shape[1], np.float32)
                fixed[ind] = 1.0
                new_edge_attr[r] = fixed

        new_batch = np.zeros(num_clusters, dtype=np.int64)
        new_batch[cluster] = bt                                        # scatter_ (last write wins)

        unpool_info = UnpoolInfo(
            edge_index=edge_index,
            cluster=jnp.asarray(cluster),
            batch=batch,
            new_edge_score=jnp.asarray(new_edge_score),
        )
        return (new_x, edge_score, jnp.asarray(new_edge_attr),
                jnp.asarray(new_edge_index), jnp.asarray(new_batch), unpool_info)


if __name__ == "__main__":
    C = 32           # in_channels
    N = 16           # nodes
    E = 32           # edges
    NUM_ATTR = 20

    key = jax.random.PRNGKey(0)
    kx, kei, kea, kw2, kb2, kw1, kb1 = jax.random.split(key, 7)

    x = jax.random.normal(kx, (N, C), dtype=jnp.float32)
    edge_index = jax.random.randint(kei, (2, E), 0, N, dtype=jnp.int32)
    attr_ids = jax.random.randint(kea, (E,), 0, NUM_ATTR, dtype=jnp.int32)
    edge_attr = jax.nn.one_hot(attr_ids, NUM_ATTR, dtype=jnp.float32)
    batch = jnp.zeros((N,), dtype=jnp.int32)

    # deterministic torch.nn.Linear-style init: U(-1/sqrt(fan_in), 1/sqrt(fan_in))
    bound = 1.0 / np.sqrt(2 * C)
    w2 = jax.random.uniform(kw2, (2 * C, 2 * C), jnp.float32, -bound, bound)   # lin2.weight (out,in)
    b2 = jax.random.uniform(kb2, (2 * C,), jnp.float32, -bound, bound)         # lin2.bias
    w1 = jax.random.uniform(kw1, (1, 2 * C), jnp.float32, -bound, bound)       # lin.weight
    b1 = jax.random.uniform(kb1, (1,), jnp.float32, -bound, bound)             # lin.bias

    pool = EdgePoolingRGCNPallas(
        in_channels=C,
        min_edge_score=0.0,
        min_edge_percentile=0.1,
        params=(w2, b2, w1, b1),
        num_attr=NUM_ATTR,
    )

    new_x, edge_score, new_edge_attr, new_edge_index, new_batch, unpool_info = pool.forward(
        x, edge_index, edge_attr, batch)
    jax.block_until_ready(new_x)
    jax.block_until_ready(edge_score)
    print("KERNEL_OK")
</pallas_src>

<mosaic_0001>
module attributes {stable_mosaic.version = 11 : i64} {
  func.func @_edge_score_kernel(%arg0: i32, %arg1: memref<1x64x128xbf16, #tpu.memory_space<vmem>>, %arg2: memref<1x64x128xbf16, #tpu.memory_space<vmem>>, %arg3: memref<2x128xi32, #tpu.memory_space<vmem>>, %arg4: memref<64x1xf32, #tpu.memory_space<vmem>>, %arg5: memref<64x1xf32, #tpu.memory_space<vmem>>, %arg6: memref<1x1xf32, #tpu.memory_space<vmem>>, %arg7: memref<1x128xf32, #tpu.memory_space<vmem>>) attributes {dimension_semantics = [#tpu.dimension_semantics<parallel>], iteration_bounds = array<i64: 1>, scalar_prefetch = 0 : i64, scratch_operands = 0 : i64, tpu.core_type = #tpu.core_type<tc>, window_params = [{pipeline_mode = #tpu.pipeline_mode<synchronous>, transform_indices = @transform_0, window_bounds = array<i64: 1, 64, 128>}, {pipeline_mode = #tpu.pipeline_mode<synchronous>, transform_indices = @transform_1, window_bounds = array<i64: 1, 64, 128>}, {transform_indices = @transform_2, window_bounds = array<i64: 2, 128>}, {pipeline_mode = #tpu.pipeline_mode<synchronous>, transform_indices = @transform_3, window_bounds = array<i64: 64, 1>}, {pipeline_mode = #tpu.pipeline_mode<synchronous>, transform_indices = @transform_4, window_bounds = array<i64: 64, 1>}, {pipeline_mode = #tpu.pipeline_mode<synchronous>, transform_indices = @transform_5, window_bounds = array<i64: 1, 1>}, {transform_indices = @transform_6, window_bounds = array<i64: 1, 128>}]} {
    %c0 = arith.constant 0 : index
    %c0_0 = arith.constant 0 : index
    %0 = vector.load %arg3[%c0, %c0_0] : memref<2x128xi32, #tpu.memory_space<vmem>>, vector<2x128xi32>
    %1 = vector.extract_strided_slice %0 {offsets = [0, 0], sizes = [1, 128], strides = [1, 1]} : vector<2x128xi32> to vector<1x128xi32>
    %2 = vector.extract_strided_slice %0 {offsets = [1, 0], sizes = [1, 128], strides = [1, 1]} : vector<2x128xi32> to vector<1x128xi32>
    %3 = tpu.iota {dimensions = array<i32: 0>} : vector<128x128xi32>
    %c0_1 = arith.constant 0 : index
    %c0_2 = arith.constant 0 : index
    %c0_3 = arith.constant 0 : index
    %4 = vector.load %arg1[%c0_1, %c0_2, %c0_3] : memref<1x64x128xbf16, #tpu.memory_space<vmem>>, vector<1x64x128xbf16>
    %5 = vector.shape_cast %4 : vector<1x64x128xbf16> to vector<64x128xbf16>
    %c0_4 = arith.constant 0 : index
    %c0_5 = arith.constant 0 : index
    %c0_6 = arith.constant 0 : index
    %6 = vector.load %arg2[%c0_4, %c0_5, %c0_6] : memref<1x64x128xbf16, #tpu.memory_space<vmem>>, vector<1x64x128xbf16>
    %7 = vector.shape_cast %6 : vector<1x64x128xbf16> to vector<64x128xbf16>
    %8 = vector.broadcast %1 : vector<1x128xi32> to vector<128x128xi32>
    %9 = arith.cmpi eq, %3, %8 : vector<128x128xi32>
    %10 = arith.extui %9 : vector<128x128xi1> to vector<128x128xi32>
    %11 = arith.sitofp %10 : vector<128x128xi32> to vector<128x128xf32>
    %12 = arith.truncf %11 : vector<128x128xf32> to vector<128x128xbf16>
    %13 = vector.broadcast %2 : vector<1x128xi32> to vector<128x128xi32>
    %14 = arith.cmpi eq, %3, %13 : vector<128x128xi32>
    %15 = arith.extui %14 : vector<128x128xi1> to vector<128x128xi32>
    %16 = arith.sitofp %15 : vector<128x128xi32> to vector<128x128xf32>
    %17 = arith.truncf %16 : vector<128x128xf32> to vector<128x128xbf16>
    %cst = arith.constant dense<0.000000e+00> : vector<64x128xf32>
    %18 = tpu.matmul %5, %12, %cst {dimension_numbers = #tpu.dot_dimension_numbers<[1], [0], [0], [1], [0, 0, 1, 1], [], []>} : vector<64x128xbf16>, vector<128x128xbf16>, vector<64x128xf32> -> vector<64x128xf32>
    %cst_7 = arith.constant dense<0.000000e+00> : vector<64x128xf32>
    %19 = tpu.matmul %7, %17, %cst_7 {dimension_numbers = #tpu.dot_dimension_numbers<[1], [0], [0], [1], [0, 0, 1, 1], [], []>} : vector<64x128xbf16>, vector<128x128xbf16>, vector<64x128xf32> -> vector<64x128xf32>
    %20 = arith.addf %18, %19 : vector<64x128xf32>
    %c0_8 = arith.constant 0 : index
    %c0_9 = arith.constant 0 : index
    %21 = vector.load %arg4[%c0_8, %c0_9] : memref<64x1xf32, #tpu.memory_space<vmem>>, vector<64x1xf32>
    %22 = vector.broadcast %21 : vector<64x1xf32> to vector<64x128xf32>
    %23 = arith.addf %20, %22 : vector<64x128xf32>
    %cst_10 = arith.constant 0.000000e+00 : f32
    %24 = vector.broadcast %cst_10 : f32 to vector<64x128xf32>
    %25 = arith.cmpf ogt, %23, %24 : vector<64x128xf32>
    %cst_11 = arith.constant 0.00999999977 : f32
    %26 = vector.broadcast %cst_11 : f32 to vector<64x128xf32>
    %27 = arith.mulf %26, %23 : vector<64x128xf32>
    %28 = arith.select %25, %23, %27 : vector<64x128xi1>, vector<64x128xf32>
    %c0_12 = arith.constant 0 : index
    %c0_13 = arith.constant 0 : index
    %29 = vector.load %arg5[%c0_12, %c0_13] : memref<64x1xf32, #tpu.memory_space<vmem>>, vector<64x1xf32>
    %30 = vector.broadcast %29 : vector<64x1xf32> to vector<64x128xf32>
    %31 = arith.mulf %28, %30 : vector<64x128xf32>
    %cst_14 = arith.constant dense<0.000000e+00> : vector<128xf32>
    %32 = vector.multi_reduction <add>, %31, %cst_14 [0] : vector<64x128xf32> to vector<128xf32>
    %33 = vector.shape_cast %32 : vector<128xf32> to vector<1x128xf32>
    %c0_15 = arith.constant 0 : index
    %c0_16 = arith.constant 0 : index
    %34 = vector.load %arg6[%c0_15, %c0_16] : memref<1x1xf32, #tpu.memory_space<vmem>>, vector<1x1xf32>
    %35 = vector.broadcast %34 : vector<1x1xf32> to vector<1x128xf32>
    %36 = arith.addf %33, %35 : vector<1x128xf32>
    %37 = math.absf %36 : vector<1x128xf32>
    %cst_17 = arith.constant 0.000000e+00 : f32
    %38 = vector.broadcast %cst_17 : f32 to vector<1x128xf32>
    %39 = arith.subf %38, %37 : vector<1x128xf32>
    %40 = math.exp %39 : vector<1x128xf32>
    %cst_18 = arith.constant 1.000000e+00 : f32
    %41 = vector.broadcast %cst_18 : f32 to vector<1x128xf32>
    %42 = arith.addf %41, %40 : vector<1x128xf32>
    %43 = tpu.reciprocal %42 {approx = true} : vector<1x128xf32> -> vector<1x128xf32>
    %cst_19 = arith.constant 0.000000e+00 : f32
    %44 = vector.broadcast %cst_19 : f32 to vector<1x128xf32>
    %45 = arith.cmpf oge, %36, %44 : vector<1x128xf32>
    %46 = arith.mulf %40, %43 : vector<1x128xf32>
    %47 = arith.select %45, %43, %46 : vector<1x128xi1>, vector<1x128xf32>
    %c0_20 = arith.constant 0 : index
    %c0_21 = arith.constant 0 : index
    %48 = vector.load %arg7[%c0_20, %c0_21] : memref<1x128xf32, #tpu.memory_space<vmem>>, vector<1x128xf32>
    tpu.vector_store %arg7[%c0_20, %c0_21], %47 {strides = array<i32>} : memref<1x128xf32, #tpu.memory_space<vmem>>, vector<1x128xf32>,
    return
  }
  func.func @transform_0(%arg0: i32) -> (i32, i32, i32) {
    %c0_i32 = arith.constant 0 : i32
    %c0_i32_0 = arith.constant 0 : i32
    %c0_i32_1 = arith.constant 0 : i32
    %c0_i32_2 = arith.constant 0 : i32
    return %c0_i32, %c0_i32_0, %c0_i32_1 : i32, i32, i32
  }
  func.func @transform_1(%arg0: i32) -> (i32, i32, i32) {
    %c0_i32 = arith.constant 0 : i32
    %c0_i32_0 = arith.constant 0 : i32
    %c0_i32_1 = arith.constant 0 : i32
    %c0_i32_2 = arith.constant 0 : i32
    return %c0_i32, %c0_i32_0, %c0_i32_1 : i32, i32, i32
  }
  func.func @transform_2(%arg0: i32) -> (i32, i32) {
    %c0_i32 = arith.constant 0 : i32
    %c0_i32_0 = arith.constant 0 : i32
    return %c0_i32, %arg0 : i32, i32
  }
  func.func @transform_3(%arg0: i32) -> (i32, i32) {
    %c0_i32 = arith.constant 0 : i32
    %c0_i32_0 = arith.constant 0 : i32
    %c0_i32_1 = arith.constant 0 : i32
    return %c0_i32, %c0_i32_0 : i32, i32
  }
  func.func @transform_4(%arg0: i32) -> (i32, i32) {
    %c0_i32 = arith.constant 0 : i32
    %c0_i32_0 = arith.constant 0 : i32
    %c0_i32_1 = arith.constant 0 : i32
    return %c0_i32, %c0_i32_0 : i32, i32
  }
  func.func @transform_5(%arg0: i32) -> (i32, i32) {
    %c0_i32 = arith.constant 0 : i32
    %c0_i32_0 = arith.constant 0 : i32
    %c0_i32_1 = arith.constant 0 : i32
    return %c0_i32, %c0_i32_0 : i32, i32
  }
  func.func @transform_6(%arg0: i32) -> (i32, i32) {
    %c0_i32 = arith.constant 0 : i32
    %c0_i32_0 = arith.constant 0 : i32
    return %c0_i32, %arg0 : i32, i32
  }
}

</mosaic_0001>

<llo_original>
// kernel: _edge_scores_impl.1
$region0: #{_edge_scores_impl.1}
  #allocation0 [shape = 'u32[]', space=smem, size = 0x4, offset = 0x4, fixed_abs, tag = 'smem constant byte address 0x4 - core index']
  #allocation1 [shape = 'u32[144,128]{1,0:T(1,128)}', space=vmem, size = 0x12000, scoped, tag = 'internal scratch']
  #allocation2 [shape = 'f32[1,1]{1,0:T(1,128)S(1)}', space=vmem, size = 0x200, scoped, tag = 'scoped memory for _edge_scores_impl.1']
  %s0 = inlined_call_operand.vmem [shape: bf16[1,64,128], index: 0, kind: input, shape index: {}]
  %s1 = inlined_call_operand.vmem [shape: bf16[1,64,128], index: 1, kind: input, shape index: {}]
  %s2 = inlined_call_operand.vmem [shape: s32[2,128], index: 2, kind: input, shape index: {}]
  %s3 = inlined_call_operand.vmem [shape: f32[64,1], index: 3, kind: input, shape index: {}]
  %s4 = inlined_call_operand.vmem [shape: f32[64,1], index: 4, kind: input, shape index: {}]
  %s5 = inlined_call_operand.<no memory space> [shape: f32[1,1], index: 5, kind: input, shape index: {}]
  %s6 = inlined_call_operand.vmem [shape: f32[1,128], index: 6, kind: output, shape index: {}]
  %s7 = sld [smem:[#allocation0]]
  $region34: #{_edge_scores_impl.1} parent=0
    _
  %s9 = ssub.s32 1, %s7
  %s10 = scalar_select 0, %s9, %s7
  %v11 = vstv %s5
  %12 = vst [vmem:[#allocation2] sm:$0x1] %v11
  // Predicated region
  $region2: #{_edge_scores_impl.1} parent=0 // pred_check
    _
  $region3: #{_edge_scores_impl.1} parent=0 // pred_check_branch
    %14 = sbr.rel (0) target = $region5
  $region4: #{_edge_scores_impl.1} parent=0 // pred_region
    _
  $region5: #{_edge_scores_impl.1} parent=0 // pred_fallthru
    _
  // Predicated region
  $region6: #{_edge_scores_impl.1} parent=0 // pred_check
    _
  $region7: #{_edge_scores_impl.1} parent=0 // pred_check_branch
    %16 = sbr.rel (0) target = $region9
  $region8: #{_edge_scores_impl.1} parent=0 // pred_region
    _
  $region9: #{_edge_scores_impl.1} parent=0 // pred_fallthru
    _
  // Predicated region
  $region10: #{_edge_scores_impl.1} parent=0 // pred_check
    _
  $region11: #{_edge_scores_impl.1} parent=0 // pred_check_branch
    %18 = sbr.rel (0) target = $region13
  $region12: #{_edge_scores_impl.1} parent=0 // pred_region
    _
  $region13: #{_edge_scores_impl.1} parent=0 // pred_fallthru
    _
  // Predicated region
  $region14: #{_edge_scores_impl.1} parent=0 // pred_check
    _
  $region15: #{_edge_scores_impl.1} parent=0 // pred_check_branch
    %20 = sbr.rel (0) target = $region17
  $region16: #{_edge_scores_impl.1} parent=0 // pred_region
    _
  $region17: #{_edge_scores_impl.1} parent=0 // pred_fallthru
    _
  // Predicated region
  $region18: #{_edge_scores_impl.1} parent=0 // pred_check
    _
  $region19: #{_edge_scores_impl.1} parent=0 // pred_check_branch
    %22 = sbr.rel (0) target = $region21
  $region20: #{_edge_scores_impl.1} parent=0 // pred_region
    _
  $region21: #{_edge_scores_impl.1} parent=0 // pred_fallthru
    _
  // Predicated region
  $region22: #{_edge_scores_impl.1} parent=0 // pred_check
    _
  $region23: #{_edge_scores_impl.1} parent=0 // pred_check_branch
    %24 = sbr.rel (0) target = $region25
  $region24: #{_edge_scores_impl.1} parent=0 // pred_region
    _
  $region25: #{_edge_scores_impl.1} parent=0 // pred_fallthru
    _
  %v26 = vld [vmem:[%s2] sm:$0x3]
  %v27 = vlaneseq
  %v28 = vshrl.u32 %v27, 7
  %v29 = vadd.s32 %v28, 8
  %v30 = vadd.s32 %v28, 16
  %v31 = vadd.s32 %v28, 24
  %v32 = vadd.s32 %v28, 32
  %v33 = vadd.s32 %v28, 40
  %v34 = vadd.s32 %v28, 48
  %v35 = vadd.s32 %v28, 56
  %v36 = vadd.s32 %v28, 64
  %v37 = vadd.s32 %v28, 72
  %v38 = vadd.s32 %v28, 80
  %v39 = vadd.s32 %v28, 88
  %v40 = vadd.s32 %v28, 96
  %v41 = vadd.s32 %v28, 104
  %v42 = vadd.s32 %v28, 112
  %v43 = vadd.s32 %v28, 120
  %v44 = vld [vmem:[%s0] sm:$0xf]
  %v45 = vld [vmem:[%s0 + $0x4] sm:$0xf]
  %v46 = vld [vmem:[%s0 + $0x8] sm:$0xf]
  %v47 = vld [vmem:[%s0 + $0xc] sm:$0xf]
  %v48 = vld [vmem:[%s0 + $0x10] sm:$0xf]
  %v49 = vld [vmem:[%s0 + $0x14] sm:$0xf]
  %v50 = vld [vmem:[%s0 + $0x18] sm:$0xf]
  %v51 = vld [vmem:[%s0 + $0x1c] sm:$0xf]
  %v52 = vld [vmem:[%s1] sm:$0xf]
  %v53 = vld [vmem:[%s1 + $0x4] sm:$0xf]
  %v54 = vld [vmem:[%s1 + $0x8] sm:$0xf]
  %v55 = vld [vmem:[%s1 + $0xc] sm:$0xf]
  %v56 = vld [vmem:[%s1 + $0x10] sm:$0xf]
  %v57 = vld [vmem:[%s1 + $0x14] sm:$0xf]
  %v58 = vld [vmem:[%s1 + $0x18] sm:$0xf]
  %v59 = vld [vmem:[%s1 + $0x1c] sm:$0xf]
  %v60 = vlaneseq
  %v61 = vshrl.u32 %v60, 7
  %v62 = vsub.s32 0, %v61
  %v63 = vrot.slane %v26, %v62
  %vm64 = vcmp.eq.s32.totalorder %v28, %v63
  %vm65 = vcmp.eq.s32.totalorder %v29, %v63
  %vm66 = vcmp.eq.s32.totalorder %v30, %v63
  %vm67 = vcmp.eq.s32.totalorder %v31, %v63
  %vm68 = vcmp.eq.s32.totalorder %v32, %v63
  %vm69 = vcmp.eq.s32.totalorder %v33, %v63
  %vm70 = vcmp.eq.s32.totalorder %v34, %v63
  %vm71 = vcmp.eq.s32.totalorder %v35, %v63
  %vm72 = vcmp.eq.s32.totalorder %v36, %v63
  %vm73 = vcmp.eq.s32.totalorder %v37, %v63
  %vm74 = vcmp.eq.s32.totalorder %v38, %v63
  %vm75 = vcmp.eq.s32.totalorder %v39, %v63
  %vm76 = vcmp.eq.s32.totalorder %v40, %v63
  %vm77 = vcmp.eq.s32.totalorder %v41, %v63
  %vm78 = vcmp.eq.s32.totalorder %v42, %v63
  %vm79 = vcmp.eq.s32.totalorder %v43, %v63
  %v80 = vsel %vm64, 1, 0
  %v81 = vsel %vm65, 1, 0
  %v82 = vsel %vm66, 1, 0
  %v83 = vsel %vm67, 1, 0
  %v84 = vsel %vm68, 1, 0
  %v85 = vsel %vm69, 1, 0
  %v86 = vsel %vm70, 1, 0
  %v87 = vsel %vm71, 1, 0
  %v88 = vsel %vm72, 1, 0
  %v89 = vsel %vm73, 1, 0
  %v90 = vsel %vm74, 1, 0
  %v91 = vsel %vm75, 1, 0
  %v92 = vsel %vm76, 1, 0
  %v93 = vsel %vm77, 1, 0
  %v94 = vsel %vm78, 1, 0
  %v95 = vsel %vm79, 1, 0
  %v96 = vcvt.s32.f32 %v80
  %v97 = vcvt.s32.f32 %v81
  %v98 = vcvt.s32.f32 %v82
  %v99 = vcvt.s32.f32 %v83
  %v100 = vcvt.s32.f32 %v84
  %v101 = vcvt.s32.f32 %v85
  %v102 = vcvt.s32.f32 %v86
  %v103 = vcvt.s32.f32 %v87
  %v104 = vcvt.s32.f32 %v88
  %v105 = vcvt.s32.f32 %v89
  %v106 = vcvt.s32.f32 %v90
  %v107 = vcvt.s32.f32 %v91
  %v108 = vcvt.s32.f32 %v92
  %v109 = vcvt.s32.f32 %v93
  %v110 = vcvt.s32.f32 %v94
  %v111 = vcvt.s32.f32 %v95
  %v112 = vpack.c.bf16 %v97, %v96
  %v113 = vpack.c.bf16 %v99, %v98
  %v114 = vpack.c.bf16 %v101, %v100
  %v115 = vpack.c.bf16 %v103, %v102
  %v116 = vpack.c.bf16 %v105, %v104
  %v117 = vpack.c.bf16 %v107, %v106
  %v118 = vpack.c.bf16 %v109, %v108
  %v119 = vpack.c.bf16 %v111, %v110
  %v120 = vlaneseq
  %v121 = vshrl.u32 %v120, 7
  %v122 = vsub.s32 1, %v121
  %v123 = vrot.slane %v26, %v122
  %vm124 = vcmp.eq.s32.totalorder %v28, %v123
  %vm125 = vcmp.eq.s32.totalorder %v29, %v123
  %vm126 = vcmp.eq.s32.totalorder %v30, %v123
  %vm127 = vcmp.eq.s32.totalorder %v31, %v123
  %vm128 = vcmp.eq.s32.totalorder %v32, %v123
  %vm129 = vcmp.eq.s32.totalorder %v33, %v123
  %vm130 = vcmp.eq.s32.totalorder %v34, %v123
  %vm131 = vcmp.eq.s32.totalorder %v35, %v123
  %vm132 = vcmp.eq.s32.totalorder %v36, %v123
  %vm133 = vcmp.eq.s32.totalorder %v37, %v123
  %vm134 = vcmp.eq.s32.totalorder %v38, %v123
  %vm135 = vcmp.eq.s32.totalorder %v39, %v123
  %vm136 = vcmp.eq.s32.totalorder %v40, %v123
  %vm137 = vcmp.eq.s32.totalorder %v41, %v123
  %vm138 = vcmp.eq.s32.totalorder %v42, %v123
  %vm139 = vcmp.eq.s32.totalorder %v43, %v123
  %v140 = vsel %vm124, 1, 0
  %v141 = vsel %vm125, 1, 0
  %v142 = vsel %vm126, 1, 0
  %v143 = vsel %vm127, 1, 0
  %v144 = vsel %vm128, 1, 0
  %v145 = vsel %vm129, 1, 0
  %v146 = vsel %vm130, 1, 0
  %v147 = vsel %vm131, 1, 0
  %v148 = vsel %vm132, 1, 0
  %v149 = vsel %vm133, 1, 0
  %v150 = vsel %vm134, 1, 0
  %v151 = vsel %vm135, 1, 0
  %v152 = vsel %vm136, 1, 0
  %v153 = vsel %vm137, 1, 0
  %v154 = vsel %vm138, 1, 0
  %v155 = vsel %vm139, 1, 0
  %v156 = vcvt.s32.f32 %v140
  %v157 = vcvt.s32.f32 %v141
  %v158 = vcvt.s32.f32 %v142
  %v159 = vcvt.s32.f32 %v143
  %v160 = vcvt.s32.f32 %v144
  %v161 = vcvt.s32.f32 %v145
  %v162 = vcvt.s32.f32 %v146
  %v163 = vcvt.s32.f32 %v147
  %v164 = vcvt.s32.f32 %v148
  %v165 = vcvt.s32.f32 %v149
  %v166 = vcvt.s32.f32 %v150
  %v167 = vcvt.s32.f32 %v151
  %v168 = vcvt.s32.f32 %v152
  %v169 = vcvt.s32.f32 %v153
  %v170 = vcvt.s32.f32 %v154
  %v171 = vcvt.s32.f32 %v155
  %v172 = vpack.c.bf16 %v157, %v156
  %v173 = vpack.c.bf16 %v159, %v158
  %v174 = vpack.c.bf16 %v161, %v160
  %v175 = vpack.c.bf16 %v163, %v162
  %v176 = vpack.c.bf16 %v165, %v164
  %v177 = vpack.c.bf16 %v167, %v166
  %v178 = vpack.c.bf16 %v169, %v168
  %v179 = vpack.c.bf16 %v171, %v170
  %v188 = vunpack.c.l.b16 %v52
  %v189 = vunpack.c.l.b16 %v53
  %v190 = vunpack.c.l.b16 %v54
  %v191 = vunpack.c.l.b16 %v55
  %v192 = vunpack.c.l.b16 %v56
  %v193 = vunpack.c.l.b16 %v57
  %v194 = vunpack.c.l.b16 %v58
  %v195 = vunpack.c.l.b16 %v59
  %v196 = vpack.c.b16 %v189, %v188
  %v197 = vpack.c.b16 %v191, %v190
  %v198 = vpack.c.b16 %v193, %v192
  %v199 = vpack.c.b16 %v195, %v194
  %204 = vmatprep.subr.bf16.mxu0 0
  %205 = vmatpush1.bf16.msra.mxu0 %v179
  %206 = vmatprep.subr.bf16.mxu0 0
  %207 = vmatpush1.bf16.msra.mxu0 %v178
  %208 = vmatprep.subr.bf16.mxu0 0
  %209 = vmatpush1.bf16.msra.mxu0 %v177
  %210 = vmatprep.subr.bf16.mxu0 0
  %211 = vmatpush1.bf16.msra.mxu0 %v176
  %212 = vmatprep.subr.bf16.mxu0 0
  %213 = vmatpush1.bf16.msra.mxu0 %v175
  %214 = vmatprep.subr.bf16.mxu0 0
  %215 = vmatpush1.bf16.msra.mxu0 %v174
  %216 = vmatprep.subr.bf16.mxu0 0
  %217 = vmatpush1.bf16.msra.mxu0 %v173
  %218 = vmatprep.subr.bf16.mxu0 0
  %219 = vmatpush1.bf16.msra.mxu0 %v172
  %220 = vmatprep.subr.bf16.mxu0 0
  %221 = vmatpush2.bf16.msra.mxu0 0
  %222 = vmatprep.subr.bf16.mxu0 0
  %223 = vmatpush2.bf16.msra.mxu0 0
  %224 = vmatprep.subr.bf16.mxu0 0
  %225 = vmatpush2.bf16.msra.mxu0 0
  %226 = vmatprep.subr.bf16.mxu0 0
  %227 = vmatpush2.bf16.msra.mxu0 0
  %228 = vmatprep.subr.bf16.mxu0 0
  %229 = vmatpush2.bf16.msra.mxu0 0
  %230 = vmatprep.subr.bf16.mxu0 0
  %231 = vmatpush2.bf16.msra.mxu0 0
  %232 = vmatprep.subr.bf16.mxu0 0
  %233 = vmatpush2.bf16.msra.mxu0 0
  %234 = vmatprep.subr.bf16.mxu0 0
  %235 = vmatpush2.bf16.msra.mxu0 0
  %236 = vmatprep.mubr.bf16.mxu0 0
  %237 = vmatmul.mubr.bf16.gmra.mxu0 %v196
  %v238 = vpop.f32.mrf.mxu0
  %v239 = vadd.f32 0.0, %v238
  %v240 = vpop.f32.mrf.mxu0
  %v241 = vpop.f32.mrf.mxu0
  %v242 = vadd.f32 0.0, %v241
  %v243 = vpop.f32.mrf.mxu0
  %244 = vmatprep.mubr.bf16.mxu0 0
  %245 = vmatmul.mubr.bf16.gmra.mxu0 %v197
  %v246 = vpop.f32.mrf.mxu0
  %v247 = vadd.f32 0.0, %v246
  %v248 = vpop.f32.mrf.mxu0
  %v249 = vpop.f32.mrf.mxu0
  %v250 = vadd.f32 0.0, %v249
  %v251 = vpop.f32.mrf.mxu0
  %252 = vmatprep.mubr.bf16.mxu0 0
  %253 = vmatmul.mubr.bf16.gmra.mxu0 %v198
  %v254 = vpop.f32.mrf.mxu0
  %v255 = vadd.f32 0.0, %v254
  %v256 = vpop.f32.mrf.mxu0
  %v257 = vpop.f32.mrf.mxu0
  %v258 = vadd.f32 0.0, %v257
  %v259 = vpop.f32.mrf.mxu0
  %260 = vmatprep.mubr.bf16.mxu0 0
  %261 = vmatmul.mubr.bf16.gmra.mxu0 %v199
  %v262 = vpop.f32.mrf.mxu0
  %v263 = vadd.f32 0.0, %v262
  %v264 = vpop.f32.mrf.mxu0
  %v265 = vpop.f32.mrf.mxu0
  %v266 = vadd.f32 0.0, %v265
  %v267 = vpop.f32.mrf.mxu0
  %268 = vdwg.mxu0
  %v277 = vunpack.c.l.b16 %v44
  %v278 = vunpack.c.l.b16 %v45
  %v279 = vunpack.c.l.b16 %v46
  %v280 = vunpack.c.l.b16 %v47
  %v281 = vunpack.c.l.b16 %v48
  %v282 = vunpack.c.l.b16 %v49
  %v283 = vunpack.c.l.b16 %v50
  %v284 = vunpack.c.l.b16 %v51
  %v285 = vpack.c.b16 %v278, %v277
  %v286 = vpack.c.b16 %v280, %v279
  %v287 = vpack.c.b16 %v282, %v281
  %v288 = vpack.c.b16 %v284, %v283
  %293 = vmatprep.subr.bf16.mxu0 0
  %294 = vmatpush1.bf16.msra.mxu0 %v119
  %295 = vmatprep.subr.bf16.mxu0 0
  %296 = vmatpush1.bf16.msra.mxu0 %v118
  %297 = vmatprep.subr.bf16.mxu0 0
  %298 = vmatpush1.bf16.msra.mxu0 %v117
  %299 = vmatprep.subr.bf16.mxu0 0
  %300 = vmatpush1.bf16.msra.mxu0 %v116
  %301 = vmatprep.subr.bf16.mxu0 0
  %302 = vmatpush1.bf16.msra.mxu0 %v115
  %303 = vmatprep.subr.bf16.mxu0 0
  %304 = vmatpush1.bf16.msra.mxu0 %v114
  %305 = vmatprep.subr.bf16.mxu0 0
  %306 = vmatpush1.bf16.msra.mxu0 %v113
  %307 = vmatprep.subr.bf16.mxu0 0
  %308 = vmatpush1.bf16.msra.mxu0 %v112
  %309 = vmatprep.subr.bf16.mxu0 0
  %310 = vmatpush2.bf16.msra.mxu0 0
  %311 = vmatprep.subr.bf16.mxu0 0
  %312 = vmatpush2.bf16.msra.mxu0 0
  %313 = vmatprep.subr.bf16.mxu0 0
  %314 = vmatpush2.bf16.msra.mxu0 0
  %315 = vmatprep.subr.bf16.mxu0 0
  %316 = vmatpush2.bf16.msra.mxu0 0
  %317 = vmatprep.subr.bf16.mxu0 0
  %318 = vmatpush2.bf16.msra.mxu0 0
  %319 = vmatprep.subr.bf16.mxu0 0
  %320 = vmatpush2.bf16.msra.mxu0 0
  %321 = vmatprep.subr.bf16.mxu0 0
  %322 = vmatpush2.bf16.msra.mxu0 0
  %323 = vmatprep.subr.bf16.mxu0 0
  %324 = vmatpush2.bf16.msra.mxu0 0
  %325 = vmatprep.mubr.bf16.mxu0 0
  %326 = vmatmul.mubr.bf16.gmra.mxu0 %v285
  %v327 = vpop.f32.mrf.mxu0
  %v328 = vadd.f32 %v239, %v327
  %v329 = vpop.f32.mrf.mxu0
  %v330 = vpop.f32.mrf.mxu0
  %v331 = vadd.f32 %v242, %v330
  %v332 = vpop.f32.mrf.mxu0
  %333 = vmatprep.mubr.bf16.mxu0 0
  %334 = vmatmul.mubr.bf16.gmra.mxu0 %v286
  %v335 = vpop.f32.mrf.mxu0
  %v336 = vadd.f32 %v247, %v335
  %v337 = vpop.f32.mrf.mxu0
  %v338 = vpop.f32.mrf.mxu0
  %v339 = vadd.f32 %v250, %v338
  %v340 = vpop.f32.mrf.mxu0
  %341 = vmatprep.mubr.bf16.mxu0 0
  %342 = vmatmul.mubr.bf16.gmra.mxu0 %v287
  %v343 = vpop.f32.mrf.mxu0
  %v344 = vadd.f32 %v255, %v343
  %v345 = vpop.f32.mrf.mxu0
  %v346 = vpop.f32.mrf.mxu0
  %v347 = vadd.f32 %v258, %v346
  %v348 = vpop.f32.mrf.mxu0
  %349 = vmatprep.mubr.bf16.mxu0 0
  %350 = vmatmul.mubr.bf16.gmra.mxu0 %v288
  %v351 = vpop.f32.mrf.mxu0
  %v352 = vadd.f32 %v263, %v351
  %v353 = vpop.f32.mrf.mxu0
  %v354 = vpop.f32.mrf.mxu0
  %v355 = vadd.f32 %v266, %v354
  %v356 = vpop.f32.mrf.mxu0
  %357 = vdwg.mxu0
  %v358 = vld [vmem:[%s3] sm:$0xff]
  %v359 = vld [vmem:[%s3 + $0x8] sm:$0xff]
  %v360 = vld [vmem:[%s3 + $0x10] sm:$0xff]
  %v361 = vld [vmem:[%s3 + $0x18] sm:$0xff]
  %v362 = vld [vmem:[%s3 + $0x20] sm:$0xff]
  %v363 = vld [vmem:[%s3 + $0x28] sm:$0xff]
  %v364 = vld [vmem:[%s3 + $0x30] sm:$0xff]
  %v365 = vld [vmem:[%s3 + $0x38] sm:$0xff]
  %367 = vset.pattern.permute.xlu0 0
  %368 = vperm.xlu0 %367, %v358
  %v369 = vpop.permute.xlu0 %368
  %372 = vset.pattern.permute.xlu0 0
  %373 = vperm.xlu0 %372, %v359
  %v374 = vpop.permute.xlu0 %373
  %377 = vset.pattern.permute.xlu0 0
  %378 = vperm.xlu0 %377, %v360
  %v379 = vpop.permute.xlu0 %378
  %382 = vset.pattern.permute.xlu0 0
  %383 = vperm.xlu0 %382, %v361
  %v384 = vpop.permute.xlu0 %383
  %387 = vset.pattern.permute.xlu0 0
  %388 = vperm.xlu0 %387, %v362
  %v389 = vpop.permute.xlu0 %388
  %392 = vset.pattern.permute.xlu0 0
  %393 = vperm.xlu0 %392, %v363
  %v394 = vpop.permute.xlu0 %393
  %397 = vset.pattern.permute.xlu0 0
  %398 = vperm.xlu0 %397, %v364
  %v399 = vpop.permute.xlu0 %398
  %402 = vset.pattern.permute.xlu0 0
  %403 = vperm.xlu0 %402, %v365
  %v404 = vpop.permute.xlu0 %403
  %v406 = vadd.f32 %v328, %v369
  %v407 = vadd.f32 %v331, %v374
  %v408 = vadd.f32 %v336, %v379
  %v409 = vadd.f32 %v339, %v384
  %v410 = vadd.f32 %v344, %v389
  %v411 = vadd.f32 %v347, %v394
  %v412 = vadd.f32 %v352, %v399
  %v413 = vadd.f32 %v355, %v404
  %vm414 = vcmp.gt.f32.partialorder %v406, 0.0
  %vm415 = vcmp.gt.f32.partialorder %v407, 0.0
  %vm416 = vcmp.gt.f32.partialorder %v408, 0.0
  %vm417 = vcmp.gt.f32.partialorder %v409, 0.0
  %vm418 = vcmp.gt.f32.partialorder %v410, 0.0
  %vm419 = vcmp.gt.f32.partialorder %v411, 0.0
  %vm420 = vcmp.gt.f32.partialorder %v412, 0.0
  %vm421 = vcmp.gt.f32.partialorder %v413, 0.0
  %v422 = vmul.f32 %v406, 0.01
  %v423 = vmul.f32 %v407, 0.01
  %v424 = vmul.f32 %v408, 0.01
  %v425 = vmul.f32 %v409, 0.01
  %v426 = vmul.f32 %v410, 0.01
  %v427 = vmul.f32 %v411, 0.01
  %v428 = vmul.f32 %v412, 0.01
  %v429 = vmul.f32 %v413, 0.01
  %v430 = vsel %vm414, %v406, %v422
  %v431 = vsel %vm415, %v407, %v423
  %v432 = vsel %vm416, %v408, %v424
  %v433 = vsel %vm417, %v409, %v425
  %v434 = vsel %vm418, %v410, %v426
  %v435 = vsel %vm419, %v411, %v427
  %v436 = vsel %vm420, %v412, %v428
  %v437 = vsel %vm421, %v413, %v429
  %v438 = vld [vmem:[%s4] sm:$0xff]
  %v439 = vld [vmem:[%s4 + $0x8] sm:$0xff]
  %v440 = vld [vmem:[%s4 + $0x10] sm:$0xff]
  %v441 = vld [vmem:[%s4 + $0x18] sm:$0xff]
  %v442 = vld [vmem:[%s4 + $0x20] sm:$0xff]
  %v443 = vld [vmem:[%s4 + $0x28] sm:$0xff]
  %v444 = vld [vmem:[%s4 + $0x30] sm:$0xff]
  %v445 = vld [vmem:[%s4 + $0x38] sm:$0xff]
  %447 = vset.pattern.permute.xlu0 0
  %448 = vperm.xlu0 %447, %v438
  %v449 = vpop.permute.xlu0 %448
  %452 = vset.pattern.permute.xlu0 0
  %453 = vperm.xlu0 %452, %v439
  %v454 = vpop.permute.xlu0 %453
  %457 = vset.pattern.permute.xlu0 0
  %458 = vperm.xlu0 %457, %v440
  %v459 = vpop.permute.xlu0 %458
  %462 = vset.pattern.permute.xlu0 0
  %463 = vperm.xlu0 %462, %v441
  %v464 = vpop.permute.xlu0 %463
  %467 = vset.pattern.permute.xlu0 0
  %468 = vperm.xlu0 %467, %v442
  %v469 = vpop.permute.xlu0 %468
  %472 = vset.pattern.permute.xlu0 0
  %473 = vperm.xlu0 %472, %v443
  %v474 = vpop.permute.xlu0 %473
  %477 = vset.pattern.permute.xlu0 0
  %478 = vperm.xlu0 %477, %v444
  %v479 = vpop.permute.xlu0 %478
  %482 = vset.pattern.permute.xlu0 0
  %483 = vperm.xlu0 %482, %v445
  %v484 = vpop.permute.xlu0 %483
  %v486 = vmul.f32 %v430, %v449
  %v487 = vmul.f32 %v431, %v454
  %v488 = vmul.f32 %v432, %v459
  %v489 = vmul.f32 %v433, %v464
  %v490 = vmul.f32 %v434, %v469
  %v491 = vmul.f32 %v435, %v474
  %v492 = vmul.f32 %v436, %v479
  %v493 = vmul.f32 %v437, %v484
  %v494 = vadd.f32 %v486, %v487
  %v495 = vadd.f32 %v494, %v488
  %v496 = vadd.f32 %v495, %v489
  %v497 = vadd.f32 %v496, %v490
  %v498 = vadd.f32 %v497, %v491
  %v499 = vadd.f32 %v498, %v492
  %v500 = vadd.f32 %v499, %v493
  %v501 = vrot.slane %v500, 4
  %v502 = vadd.f32 %v500, %v501
  %v503 = vrot.slane %v502, 2
  %v504 = vadd.f32 %v502, %v503
  %v505 = vrot.slane %v504, 1
  %v506 = vadd.f32 %v504, %v505
  %v507 = vld [vmem:[#allocation2] sm:$0x1]
  %509 = vset.pattern.permute.xlu0 0
  %510 = vperm.xlu0 %509, %v507
  %v511 = vpop.permute.xlu0 %510
  %v513 = vlaneseq
  %v514 = vshrl.u32 %v513, 7
  %v515 = vsub.s32 0, %v514
  %v516 = vrot.slane %v511, %v515
  %v517 = vadd.f32 %v506, %v516
  %v518 = vand.u32 2147483647, %v517
  %v519 = vsub.f32 0.0, %v518
  %v520 = vmul.f32 %v519, 1.442695
  %v521 = vpow.pop %v520
  %v522 = vadd.f32 %v521, 1.0
  %v523 = vrcp.pop %v522
  %vm524 = vcmp.ge.f32.partialorder %v517, 0.0
  %v525 = vmul.f32 %v521, %v523
  %v526 = vsel %vm524, %v523, %v525
  %527 = vst [vmem:[%s6] sm:$0x1] %v526
  // Predicated region
  $region26: #{_edge_scores_impl.1} parent=0 // pred_check
    _
  $region27: #{_edge_scores_impl.1} parent=0 // pred_check_branch
    %529 = sbr.rel (0) target = $region29
  $region28: #{_edge_scores_impl.1} parent=0 // pred_region
    _
  $region29: #{_edge_scores_impl.1} parent=0 // pred_fallthru
    _
  // Predicated region
  $region30: #{_edge_scores_impl.1} parent=0 // pred_check
    _
  $region31: #{_edge_scores_impl.1} parent=0 // pred_check_branch
    %531 = sbr.rel (0) target = $region33
  $region32: #{_edge_scores_impl.1} parent=0 // pred_region
    _
  $region33: #{_edge_scores_impl.1} parent=0 // pred_fallthru
    _

</llo_original>
